<compile_context>
chip_gen: v6e
topology: v6e:2x2x1
jax: 0.10.0
libtpu: 0.0.40
codegen_flags: <defaults>
</compile_context>

<pallas_src>
import jax
import jax.numpy as jnp
from jax.experimental import pallas as pl
from jax.experimental.pallas import tpu as pltpu

Q_GROUP_SIZE = 64
LANES = 128
GROUPS_PER_ROW = LANES // Q_GROUP_SIZE        # 2 quantization groups per lane-dense row
BIT = 2
MAX_INT = float(2 ** BIT - 1)                 # 3
MIN_INT = 0.0
CLAMP_EPS = 1e-5

TARGET_BLOCK_BYTES = 4 << 20                  # ~4 MiB per I/O block
MIN_BLOCKS = 8                                # keep v7x's 2 TCs + pipelining busy
VMEM_LIMIT_BYTES = 32 << 20                   # >= 2*(in+out) blocks, <= every chip's VMEM


def _round_up(a, b):
    return (a + b - 1) // b * b


def _ste_int2_asym_kernel(x_ref, o_ref):
    # x_ref/o_ref: (ROW_TILE, 128) — each 128-lane row holds two 64-element groups.
    x = x_ref[...].astype(jnp.float32)

    lane = jax.lax.broadcasted_iota(jnp.int32, x.shape, 1)
    is_left = lane < Q_GROUP_SIZE

    neg_inf = jnp.float32(-jnp.inf)
    pos_inf = jnp.float32(jnp.inf)
    # Full-128-lane masked reductions (native full-lane reduces; no half-slice copies).
    max_l = jnp.max(jnp.where(is_left, x, neg_inf), axis=1, keepdims=True)
    max_r = jnp.max(jnp.where(is_left, neg_inf, x), axis=1, keepdims=True)
    min_l = jnp.min(jnp.where(is_left, x, pos_inf), axis=1, keepdims=True)
    min_r = jnp.min(jnp.where(is_left, pos_inf, x), axis=1, keepdims=True)

    # Only two lane-broadcast + select pairs; the rest is full-width VPU/EUP math.
    max_full = jnp.where(is_left, max_l, max_r)
    min_full = jnp.where(is_left, min_l, min_r)

    # scales = (max - min).clamp(min=1e-5) / (2**bit - 1)
    scales = jnp.maximum(max_full - min_full, CLAMP_EPS) / MAX_INT
    # Exact reciprocal (correctly rounded divide), then multiplies; may differ from
    # torch's per-element divide by <=1 ulp before rounding (documented below).
    inv_scales = 1.0 / scales
    # zeros = clamp(-round(min / scales), 0, 3); torch.round == round-half-to-even.
    zeros = jnp.clip(-jnp.round(min_full * inv_scales), MIN_INT, MAX_INT)

    # Round.apply(x) = sign(x) * floor(|x| + 0.5)  == round half away from zero.
    rounded = jax.lax.round(x * inv_scales, jax.lax.RoundingMethod.AWAY_FROM_ZERO)
    q = jnp.clip(rounded + zeros, MIN_INT, MAX_INT)
    o_ref[...] = ((q - zeros) * scales).astype(o_ref.dtype)


def ste_int2_asym_quantize(x, q_group_size=Q_GROUP_SIZE):
    """Fake-quantize x with 2-bit asymmetric group quantization (STE forward).
    TODO(synk): the STE backward (identity gradient of Round) is not implemented —
    forward pass only, matching the nn.Module's forward()."""
    org_shape = x.shape
    org_dtype = x.dtype
    assert org_shape[-1] % q_group_size == 0, "last dim must be divisible by group size"
    assert q_group_size == Q_GROUP_SIZE, "kernel packing is specialized to group size 64"

    flat = x.reshape(-1)                       # no copy for a contiguous input
    n = flat.shape[0]                          # multiple of 64 by the assert above
    packed_rows = pl.cdiv(n, LANES)            # lane-dense 128-wide rows (2 groups/row)

    # At most one inert 64-element zero group of padding (only if the group count is
    # odd); the padded group quantizes to zeros and is sliced off afterwards. The row
    # axis is never padded — ragged last blocks are handled by the grid.
    pad = packed_rows * LANES - n
    if pad:
        flat = jnp.pad(flat, (0, pad))
    x_packed = flat.reshape(packed_rows, LANES)

    itemsize = jnp.dtype(org_dtype).itemsize
    sub = max(8, 32 // itemsize)               # sublane packing: 8 f32, 16 bf16, 32 i8
    row_cap = max(sub, (TARGET_BLOCK_BYTES // (LANES * itemsize)) // sub * sub)

    if packed_rows >= MIN_BLOCKS * 8:
        # Enough rows to split: aim for >= MIN_BLOCKS blocks, capped at ~4 MiB each.
        row_tile = min(row_cap, _round_up(pl.cdiv(packed_rows, MIN_BLOCKS), sub))
        grid_rows = pl.cdiv(packed_rows, row_tile)
    else:
        # Tiny input: one block covering the whole (first-dim-exact) array.
        row_tile = packed_rows
        grid_rows = 1

    out = pl.pallas_call(
        _ste_int2_asym_kernel,
        out_shape=jax.ShapeDtypeStruct((packed_rows, LANES), org_dtype),
        grid_spec=pltpu.PrefetchScalarGridSpec(
            num_scalar_prefetch=0,
            grid=(grid_rows,),
            in_specs=[pl.BlockSpec((row_tile, LANES), lambda i: (i, 0))],
            out_specs=pl.BlockSpec((row_tile, LANES), lambda i: (i, 0)),
        ),
        compiler_params=pltpu.CompilerParams(
            # Independent row blocks: shard across v7x's two TensorCores.
            dimension_semantics=("parallel",),
            vmem_limit_bytes=VMEM_LIMIT_BYTES,
        ),
        cost_estimate=pl.CostEstimate(
            flops=10 * n,
            transcendentals=0,
            bytes_accessed=2 * n * itemsize,
        ),
    )(x_packed)

    out_flat = out.reshape(-1)
    if pad:
        out_flat = out_flat[:n]
    return out_flat.reshape(org_shape)


def _reference(x, q_group_size=Q_GROUP_SIZE):
    """Pure-JAX mirror of the PyTorch forward (same exact-reciprocal formulation as the
    kernel; differs from torch's per-element divide by <= 1 ulp before rounding)."""
    org_shape = x.shape
    xf = x.reshape(-1, q_group_size).astype(jnp.float32)
    max_val = jnp.max(xf, axis=1, keepdims=True)
    min_val = jnp.min(xf, axis=1, keepdims=True)
    scales = jnp.maximum(max_val - min_val, CLAMP_EPS) / MAX_INT
    inv_scales = 1.0 / scales
    zeros = jnp.clip(-jnp.round(min_val * inv_scales), MIN_INT, MAX_INT)
    xs = xf * inv_scales
    rounded = jnp.sign(xs) * jnp.floor(jnp.abs(xs) + 0.5)
    q = jnp.clip(rounded + zeros, MIN_INT, MAX_INT)
    out = (q - zeros) * scales
    return out.reshape(org_shape).astype(x.dtype)


if __name__ == "__main__":
    key = jax.random.PRNGKey(0)
    # NCHW-style input whose last dim is divisible by q_group_size=64 (the module asserts this).
    x = jax.random.normal(key, (2, 4, 16, 64), dtype=jnp.float32)

    y = jax.block_until_ready(ste_int2_asym_quantize(x))
    y_ref = _reference(x)

    assert y.shape == x.shape and y.dtype == x.dtype
    assert jnp.allclose(y, y_ref, atol=1e-6, rtol=1e-6), float(jnp.max(jnp.abs(y - y_ref)))
    print("KERNEL_OK")
</pallas_src>

<mosaic_0001>
module attributes {stable_mosaic.version = 11 : i64} {
  func.func @_ste_int2_asym_kernel(%arg0: i32, %arg1: memref<8x128xf32, #tpu.memory_space<vmem>>, %arg2: memref<8x128xf32, #tpu.memory_space<vmem>>) attributes {dimension_semantics = [#tpu.dimension_semantics<parallel>], iteration_bounds = array<i64: 8>, scalar_prefetch = 0 : i64, scratch_operands = 0 : i64, tpu.core_type = #tpu.core_type<tc>, window_params = [{transform_indices = @transform_0, window_bounds = array<i64: 8, 128>}, {transform_indices = @transform_1, window_bounds = array<i64: 8, 128>}]} {
    %c0 = arith.constant 0 : index
    %c0_0 = arith.constant 0 : index
    %0 = vector.load %arg1[%c0, %c0_0] : memref<8x128xf32, #tpu.memory_space<vmem>>, vector<8x128xf32>
    %1 = tpu.iota {dimensions = array<i32: 1>} : vector<8x128xi32>
    %c64_i32 = arith.constant 64 : i32
    %2 = vector.broadcast %c64_i32 : i32 to vector<8x128xi32>
    %3 = arith.cmpi slt, %1, %2 : vector<8x128xi32>
    %cst = arith.constant 0xFF800000 : f32
    %4 = vector.broadcast %cst : f32 to vector<8x128xf32>
    %5 = arith.select %3, %0, %4 : vector<8x128xi1>, vector<8x128xf32>
    %cst_1 = arith.constant dense<0xFF800000> : vector<8xf32>
    %6 = vector.multi_reduction <maximumf>, %5, %cst_1 [1] : vector<8x128xf32> to vector<8xf32>
    %7 = vector.shape_cast %6 : vector<8xf32> to vector<8x1xf32>
    %cst_2 = arith.constant 0xFF800000 : f32
    %8 = vector.broadcast %cst_2 : f32 to vector<8x128xf32>
    %9 = arith.select %3, %8, %0 : vector<8x128xi1>, vector<8x128xf32>
    %cst_3 = arith.constant dense<0xFF800000> : vector<8xf32>
    %10 = vector.multi_reduction <maximumf>, %9, %cst_3 [1] : vector<8x128xf32> to vector<8xf32>
    %11 = vector.shape_cast %10 : vector<8xf32> to vector<8x1xf32>
    %cst_4 = arith.constant 0x7F800000 : f32
    %12 = vector.broadcast %cst_4 : f32 to vector<8x128xf32>
    %13 = arith.select %3, %0, %12 : vector<8x128xi1>, vector<8x128xf32>
    %cst_5 = arith.constant dense<0x7F800000> : vector<8xf32>
    %14 = vector.multi_reduction <minimumf>, %13, %cst_5 [1] : vector<8x128xf32> to vector<8xf32>
    %15 = vector.shape_cast %14 : vector<8xf32> to vector<8x1xf32>
    %cst_6 = arith.constant 0x7F800000 : f32
    %16 = vector.broadcast %cst_6 : f32 to vector<8x128xf32>
    %17 = arith.select %3, %16, %0 : vector<8x128xi1>, vector<8x128xf32>
    %cst_7 = arith.constant dense<0x7F800000> : vector<8xf32>
    %18 = vector.multi_reduction <minimumf>, %17, %cst_7 [1] : vector<8x128xf32> to vector<8xf32>
    %19 = vector.shape_cast %18 : vector<8xf32> to vector<8x1xf32>
    %20 = vector.shape_cast %7 : vector<8x1xf32> to vector<8x1xf32>
    %21 = vector.broadcast %20 : vector<8x1xf32> to vector<8x128xf32>
    %22 = vector.shape_cast %11 : vector<8x1xf32> to vector<8x1xf32>
    %23 = vector.broadcast %22 : vector<8x1xf32> to vector<8x128xf32>
    %24 = arith.select %3, %21, %23 : vector<8x128xi1>, vector<8x128xf32>
    %25 = vector.shape_cast %15 : vector<8x1xf32> to vector<8x1xf32>
    %26 = vector.broadcast %25 : vector<8x1xf32> to vector<8x128xf32>
    %27 = vector.shape_cast %19 : vector<8x1xf32> to vector<8x1xf32>
    %28 = vector.broadcast %27 : vector<8x1xf32> to vector<8x128xf32>
    %29 = arith.select %3, %26, %28 : vector<8x128xi1>, vector<8x128xf32>
    %30 = arith.subf %24, %29 : vector<8x128xf32>
    %cst_8 = arith.constant 9.99999974E-6 : f32
    %31 = vector.broadcast %cst_8 : f32 to vector<8x128xf32>
    %32 = arith.maximumf %30, %31 : vector<8x128xf32>
    %cst_9 = arith.constant 3.000000e+00 : f32
    %33 = vector.broadcast %cst_9 : f32 to vector<8x128xf32>
    %34 = arith.divf %32, %33 : vector<8x128xf32>
    %cst_10 = arith.constant 1.000000e+00 : f32
    %35 = vector.broadcast %cst_10 : f32 to vector<8x128xf32>
    %36 = arith.divf %35, %34 : vector<8x128xf32>
    %37 = arith.mulf %29, %36 : vector<8x128xf32>
    %38 = math.roundeven %37 : vector<8x128xf32>
    %cst_11 = arith.constant 0.000000e+00 : f32
    %39 = vector.broadcast %cst_11 : f32 to vector<8x128xf32>
    %40 = arith.subf %39, %38 : vector<8x128xf32>
    %cst_12 = arith.constant 0.000000e+00 : f32
    %cst_13 = arith.constant 3.000000e+00 : f32
    %41 = vector.broadcast %cst_12 : f32 to vector<8x128xf32>
    %42 = arith.maximumf %41, %40 : vector<8x128xf32>
    %43 = vector.broadcast %cst_13 : f32 to vector<8x128xf32>
    %44 = arith.minimumf %43, %42 : vector<8x128xf32>
    %45 = arith.mulf %0, %36 : vector<8x128xf32>
    %46 = math.round %45 : vector<8x128xf32>
    %47 = arith.addf %46, %44 : vector<8x128xf32>
    %cst_14 = arith.constant 0.000000e+00 : f32
    %cst_15 = arith.constant 3.000000e+00 : f32
    %48 = vector.broadcast %cst_14 : f32 to vector<8x128xf32>
    %49 = arith.maximumf %48, %47 : vector<8x128xf32>
    %50 = vector.broadcast %cst_15 : f32 to vector<8x128xf32>
    %51 = arith.minimumf %50, %49 : vector<8x128xf32>
    %52 = arith.subf %51, %44 : vector<8x128xf32>
    %53 = arith.mulf %52, %34 : vector<8x128xf32>
    %c0_16 = arith.constant 0 : index
    %c0_17 = arith.constant 0 : index
    %54 = vector.load %arg2[%c0_16, %c0_17] : memref<8x128xf32, #tpu.memory_space<vmem>>, vector<8x128xf32>
    tpu.vector_store %arg2[%c0_16, %c0_17], %53 {strides = array<i32>} : memref<8x128xf32, #tpu.memory_space<vmem>>, vector<8x128xf32>,
    return
  }
  func.func @transform_0(%arg0: i32) -> (i32, i32) {
    %c0_i32 = arith.constant 0 : i32
    %c0_i32_0 = arith.constant 0 : i32
    return %arg0, %c0_i32 : i32, i32
  }
  func.func @transform_1(%arg0: i32) -> (i32, i32) {
    %c0_i32 = arith.constant 0 : i32
    %c0_i32_0 = arith.constant 0 : i32
    return %arg0, %c0_i32 : i32, i32
  }
}

</mosaic_0001>

<llo_original>
// kernel: tpu_custom_call.1
$region0: #{tpu_custom_call.1}
  #allocation0 [shape = 'u32[]', space=smem, size = 0x4, offset = 0x4, fixed_abs, tag = 'smem constant byte address 0x4 - core index']
  #allocation1 [shape = 'u32[144,128]{1,0:T(1,128)}', space=vmem, size = 0x12000, scoped, tag = 'internal scratch']
  %s0 = inlined_call_operand.hbm [shape: f32[64,128], index: 0, kind: input, shape index: {}]
  %s1 = inlined_call_operand.hbm [shape: f32[64,128], index: 1, kind: output, shape index: {}]
  %s2 = sld [smem:[#allocation0]]
  $region41: #{tpu_custom_call.1} parent=0
    _
  %s4 = ssub.s32 1, %s2
  %s5 = scalar_select 0, %s4, %s2
  $region1: #{tpu_custom_call.1} parent=0
    #allocation2 [shape = 'u8[8192]{0}', space=vmem, size = 0x2000, scoped, tag = 'input window, operand 0']
    #allocation3 [shape = 's32[2]{0}', space=sflag, size = 0x8, scoped, tag = 'scoped memory for tpu_custom_call.1']
    #allocation4 [shape = 's32[2]{0}', space=sflag, size = 0x8, scoped, tag = 'scoped memory for tpu_custom_call.1']
    #allocation5 [shape = 'u8[8192]{0}', space=vmem, size = 0x2000, scoped, tag = 'output window, operand 0']
    %6 = vsyncpa [#allocation3], 0
    %s7 = scalar_lea.sflag [#allocation3], 1
    %8 = vsyncpa %s7, 0
    %9 = vsyncpa [#allocation4], 0
    %s10 = scalar_lea.sflag [#allocation4], 1
    %11 = vsyncpa %s10, 0
    loop: start=0, step=1, limit=10
    $region2: #{tpu_custom_call.1} parent=1 // loop_pre_header
      _
    $region3: #{tpu_custom_call.1} parent=1 // loop_header
      %s13 = sphi 0, %s17
      %p14 = scmp.ge.s32.totalorder %s13, 10
      %s23 = sphi 0, %s25
      %s26 = sphi 0, %s23
      %s27 = sphi 0, %s26
      %s43 = sphi 0, %s27
      %s49 = sphi 0, %s51
      %s52 = sphi 0, %s49
      %s53 = sphi 0, %s52
      %s69 = sphi 0, %s53
    $region4: #{tpu_custom_call.1} parent=1 // loop_header_branch
      %16 = sbr.rel (%p14) target = $region8
    $region5: #{tpu_custom_call.1} parent=1 // loop_body
      %s18 = ssub.s32 %s13, 1
      %s19 = ssub.s32 %s13, 2
      %s20 = sadd.s32 %s13, 1
      %s21 = ssub.s32 %s13, %s20
      %p22 = scmp.eq.s32.totalorder %s21, 0
      %s24 = sadd.s32 %s23, 1
      %s25 = scalar_select %p22, %s23, %s24
      %p28 = pneg %p22
      %p29 = scmp.eq.s32.totalorder %s13, 7
      %p30 = por %p28, %p29
      %p31 = scmp.ne.s32.totalorder %s23, %s26
      %p32 = scmp.eq.s32.totalorder %s13, 0
      %p33 = por %p31, %p32
      %p34 = scmp.ne.s32.totalorder %s23, %s26
      %p35 = scmp.eq.s32.totalorder %s18, 7
      %p36 = por %p34, %p35
      %p37 = scmp.ne.s32.totalorder %s26, %s27
      %p38 = scmp.eq.s32.totalorder %s18, 0
      %p39 = por %p37, %p38
      %p40 = scmp.ne.s32.totalorder %s26, %s27
      %p41 = scmp.eq.s32.totalorder %s19, 7
      %p42 = por %p40, %p41
      %p44 = scmp.ne.s32.totalorder %s27, %s43
      %p45 = scmp.eq.s32.totalorder %s19, 0
      %p46 = por %p44, %p45
      %s47 = ssub.s32 %s13, %s20
      %p48 = scmp.eq.s32.totalorder %s47, 0
      %s50 = sadd.s32 %s49, 1
      %s51 = scalar_select %p48, %s49, %s50
      %p54 = pneg %p48
      %p55 = scmp.eq.s32.totalorder %s13, 7
      %p56 = por %p54, %p55
      %p57 = scmp.ne.s32.totalorder %s49, %s52
      %p58 = scmp.eq.s32.totalorder %s13, 0
      %p59 = por %p57, %p58
      %p60 = scmp.ne.s32.totalorder %s49, %s52
      %p61 = scmp.eq.s32.totalorder %s18, 7
      %p62 = por %p60, %p61
      %p63 = scmp.ne.s32.totalorder %s52, %s53
      %p64 = scmp.eq.s32.totalorder %s18, 0
      %p65 = por %p63, %p64
      %p66 = scmp.ne.s32.totalorder %s52, %s53
      %p67 = scmp.eq.s32.totalorder %s19, 7
      %p68 = por %p66, %p67
      %p70 = scmp.ne.s32.totalorder %s53, %s69
      %p71 = scmp.eq.s32.totalorder %s19, 0
      %p72 = por %p70, %p71
      %p73 = scmp.le.s32.totalorder 1, %s13
      %p74 = scmp.lt.s32.totalorder %s13, 9
      %p75 = pnand %p73, %p74
      %p76 = pneg %p75
      // Predicated region
      $region9: #{tpu_custom_call.1} parent=5 // pred_check
        _
      $region10: #{tpu_custom_call.1} parent=5 // pred_check_branch
        %78 = sbr.rel (%p75) target = $region12
      $region11: #{tpu_custom_call.1} parent=5 // pred_region
        %s79 = ssub.s32 %s13, 1
      $region12: #{tpu_custom_call.1} parent=5 // pred_fallthru
        _
      %p80 = scmp.lt.s32.totalorder %s13, 8
      // Predicated region
      $region13: #{tpu_custom_call.1} parent=5 // pred_check
        %p81 = pneg %p80
      $region14: #{tpu_custom_call.1} parent=5 // pred_check_branch
        %83 = sbr.rel (%p81) target = $region16
      $region15: #{tpu_custom_call.1} parent=5 // pred_region
        // Predicated region
        $region17: #{tpu_custom_call.1} parent=15 // pred_check
          %p84 = pneg %p33
        $region18: #{tpu_custom_call.1} parent=15 // pred_check_branch
          %86 = sbr.rel (%p84) target = $region20
        $region19: #{tpu_custom_call.1} parent=15 // pred_region
          %s87 = sand.u32 %s23, 1
          %s88 = scalar_lea.sflag [#allocation3], %s87
          %s89 = sand.u32 %s23, 1
          %s90 = smul.addr %s89, 8
          %s91 = scalar_lea.vmem [#allocation2], %s90
          %s93 = ssub.s32 128, 128
          %94 = vsyncadd %s88, %s93
          %s95 = smul.addr %s13, 128
          %s96 = scalar_lea.hbm %s0, %s95
          %s98 = sshll.u32 %s91, 4
          %s99 = int_to_ptr.vmem [resolvable:$true] %s98
          %101 = dma.hbm_to_vmem [thread:$0]  %s96, 128, %s99, %s88
        $region20: #{tpu_custom_call.1} parent=15 // pred_fallthru
          _
      $region16: #{tpu_custom_call.1} parent=5 // pred_fallthru
        _
      %p102 = scmp.le.s32.totalorder 1, %s13
      %p103 = scmp.lt.s32.totalorder %s13, 9
      %p104 = pnand %p102, %p103
      %p105 = pneg %p104
      // Predicated region
      $region21: #{tpu_custom_call.1} parent=5 // pred_check
        _
      $region22: #{tpu_custom_call.1} parent=5 // pred_check_branch
        %107 = sbr.rel (%p104) target = $region24
      $region23: #{tpu_custom_call.1} parent=5 // pred_region
        %s108 = ssub.s32 %s13, 1
        %s109 = sand.u32 %s26, 1
        %s110 = scalar_lea.sflag [#allocation3], %s109
        %s111 = sand.u32 %s26, 1
        %s112 = smul.addr %s111, 8
        %s113 = scalar_lea.vmem [#allocation2], %s112
        // Predicated region
        $region25: #{tpu_custom_call.1} parent=23 // pred_check
          %p114 = pneg %p39
        $region26: #{tpu_custom_call.1} parent=23 // pred_check_branch
          %116 = sbr.rel (%p114) target = $region28
        $region27: #{tpu_custom_call.1} parent=23 // pred_region
          %117 = dma.done %s110, 128
        $region28: #{tpu_custom_call.1} parent=23 // pred_fallthru
          _
        %s118 = sand.u32 %s26, 1
        %s119 = scalar_lea.sflag [#allocation3], %s118
        %s120 = sand.u32 %s26, 1
        %s121 = smul.addr %s120, 8
        %s122 = scalar_lea.vmem [#allocation2], %s121
        %p123 = pneg %p39
        %p124 = pneg %p36
        %p125 = pneg %p65
        %p126 = pneg %p62
        %s127 = sand.u32 %s52, 1
        %s128 = scalar_lea.sflag [#allocation4], %s127
        %s129 = sand.u32 %s52, 1
        %s130 = smul.addr %s129, 8
        %s131 = scalar_lea.vmem [#allocation5], %s130
        %v132 = vld [vmem:[%s113] sm:$0xff]
        %v133 = vlaneseq
        %v134 = vand.u32 %v133, 127
        %vm135 = vcmp.lt.s32.totalorder %v134, 64
        %v136 = vsel %vm135, %v132, -inf
        %137 = vmax.xlane.f32.xlu0 %v136
        %v138 = vpop.xlane.xlu0 %137
        %v139 = vsel %vm135, -inf, %v132
        %140 = vmax.xlane.f32.xlu0 %v139
        %v141 = vpop.xlane.xlu0 %140
        %v142 = vsel %vm135, %v132, inf
        %143 = vmin.xlane.f32.xlu0 %v142
        %v144 = vpop.xlane.xlu0 %143
        %v145 = vsel %vm135, inf, %v132
        %146 = vmin.xlane.f32.xlu0 %v145
        %v147 = vpop.xlane.xlu0 %146
        %v148 = vsel %vm135, %v138, %v141
        %v149 = vsel %vm135, %v144, %v147
        %v150 = vsub.f32 %v148, %v149
        %v151 = vmax.f32 %v150, 1e-05
        %v152 = vrcp.pop 3.0
        %v153 = vmul.f32 %v151, %v152
        %v154 = vrcp.pop %v153
        %v155 = vmul.f32 1.0, %v154
        %v156 = vmul.f32 %v149, %v155
        %v157 = vround.ne.pseudo %v156
        %v158 = vsub.f32 0.0, %v157
        %v159 = vmax.f32 %v158, 0.0
        %v160 = vmin.f32 %v159, 3.0
        %v161 = vmul.f32 %v132, %v155
        %v162 = vround.rtna.f32 %v161
        %v163 = vadd.f32 %v162, %v160
        %v164 = vmax.f32 %v163, 0.0
        %v165 = vmin.f32 %v164, 3.0
        %v166 = vsub.f32 %v165, %v160
        %v167 = vmul.f32 %v166, %v153
        %168 = vst [vmem:[%s131] sm:$0xff] %v167
        %s169 = sand.u32 %s52, 1
        %s170 = scalar_lea.sflag [#allocation4], %s169
        %s171 = sand.u32 %s52, 1
        %s172 = smul.addr %s171, 8
        %s173 = scalar_lea.vmem [#allocation5], %s172
        // Predicated region
        $region29: #{tpu_custom_call.1} parent=23 // pred_check
          %p174 = pneg %p62
        $region30: #{tpu_custom_call.1} parent=23 // pred_check_branch
          %176 = sbr.rel (%p174) target = $region32
        $region31: #{tpu_custom_call.1} parent=23 // pred_region
          %s178 = ssub.s32 128, 128
          %179 = vsyncadd %s170, %s178
          %s180 = smul.addr %s18, 128
          %s181 = scalar_lea.hbm %s1, %s180
          %s183 = sshll.u32 %s173, 4
          %s184 = int_to_ptr.vmem [resolvable:$true] %s183
          %186 = dma.vmem_to_hbm [thread:$0]  %s184, 128, %s181, %s170
        $region32: #{tpu_custom_call.1} parent=23 // pred_fallthru
          _
      $region24: #{tpu_custom_call.1} parent=5 // pred_fallthru
        _
      %p187 = scmp.le.s32.totalorder 2, %s13
      // Predicated region
      $region33: #{tpu_custom_call.1} parent=5 // pred_check
        %p188 = pneg %p187
      $region34: #{tpu_custom_call.1} parent=5 // pred_check_branch
        %190 = sbr.rel (%p188) target = $region36
      $region35: #{tpu_custom_call.1} parent=5 // pred_region
        %s191 = ssub.s32 %s13, 2
        // Predicated region
        $region37: #{tpu_custom_call.1} parent=35 // pred_check
          %p192 = pneg %p68
        $region38: #{tpu_custom_call.1} parent=35 // pred_check_branch
          %194 = sbr.rel (%p192) target = $region40
        $region39: #{tpu_custom_call.1} parent=35 // pred_region
          %s195 = sand.u32 %s53, 1
          %s196 = scalar_lea.sflag [#allocation4], %s195
          %s197 = sand.u32 %s53, 1
          %s198 = smul.addr %s197, 8
          %s199 = scalar_lea.vmem [#allocation5], %s198
          %200 = dma.done %s196, 128
        $region40: #{tpu_custom_call.1} parent=35 // pred_fallthru
          _
      $region36: #{tpu_custom_call.1} parent=5 // pred_fallthru
        _
    $region6: #{tpu_custom_call.1} parent=1 // loop_footer
      %s17 = sadd.s32 1, %s13
    $region7: #{tpu_custom_call.1} parent=1 // loop_footer_branch
      %12 = sbr.rel target = $region3
    $region8: #{tpu_custom_call.1} parent=1 // loop_exit
      _
    %201 = vsyncpa [#allocation3], 1
    %s202 = scalar_lea.sflag [#allocation3], 1
    %203 = vsyncpa %s202, 1
    %204 = vsyncpa [#allocation4], 1
    %s205 = scalar_lea.sflag [#allocation4], 1
    %206 = vsyncpa %s205, 1

</llo_original>
